<compile_context>
chip_gen: v5e
topology: v5e:2x2
jax: 0.10.0
libtpu: 0.0.40
codegen_flags: <defaults>
</compile_context>

<pallas_src>
import functools

import jax
import jax.numpy as jnp
from jax.experimental import pallas as pl
from jax.experimental.pallas import tpu as pltpu


# Per-tile budget for the (double-buffered) x tiles of the tiled path.
_L_TILE_BUDGET_BYTES = 8 * 1024 * 1024
# Largest per-batch (C, L) slab that still goes through the single-pass path.
_MAX_FUSED_PER_BATCH_BYTES = 6 * 1024 * 1024


def _pick_l_tile(L, bytes_per_l, budget=_L_TILE_BUDGET_BYTES):
    """Largest power-of-two multiple of 128 that divides L and fits `budget`.

    Falls back to the full L when L is not 128-aligned (full-extent blocks are
    always legal; they just lower to masked stores for small L).
    """
    if L % 128 != 0:
        return L
    tl = 128
    while L % (tl * 2) == 0 and (tl * 2) * bytes_per_l <= budget:
        tl *= 2
    return tl


def _vmem_limit(double_buffered_bytes):
    # Explicit scoped-VMEM limit: estimated pipeline working set + headroom,
    # clamped to a range valid on every generation (v5e default scoped limit is
    # only 16 MiB; v7x physical VMEM is 64 MiB, so stay below it with margin
    # for compiler scratch).
    return int(min(max(double_buffered_bytes + 8 * 1024 * 1024,
                       16 * 1024 * 1024),
                   56 * 1024 * 1024))


# ----------------------------------------------------------------------------
# Per-batch fused kernel: squeeze + excitation + scale in one pass over x.
# ----------------------------------------------------------------------------
def _se_fused_kernel(x_ref, w1_ref, w2_ref, o_ref, *, inv_len):
    # x_ref/o_ref: (1, C, L); w1_ref: (Cr, C); w2_ref: (C, Cr)
    xb = x_ref[0]                                                       # (C, L)
    mean = jnp.sum(xb.astype(jnp.float32), axis=-1, keepdims=True) * inv_len   # (C, 1)
    h = jnp.maximum(
        jnp.dot(w1_ref[...], mean, preferred_element_type=jnp.float32), 0.0)   # (Cr, 1)
    s = jax.nn.sigmoid(
        jnp.dot(w2_ref[...], h, preferred_element_type=jnp.float32))           # (C, 1)
    o_ref[0] = (xb * s).astype(o_ref.dtype)                             # broadcast over L


def _se_fused(x, w1, w2):
    B, C, L = x.shape
    Cr = w1.shape[0]
    isz = x.dtype.itemsize
    kernel = functools.partial(_se_fused_kernel, inv_len=1.0 / float(L))
    # Double-buffered in + out blocks plus (tiny) weights.
    working = 4 * C * L * isz + 4 * (Cr * C) * 4
    return pl.pallas_call(
        kernel,
        out_shape=jax.ShapeDtypeStruct((B, C, L), x.dtype),
        grid_spec=pltpu.PrefetchScalarGridSpec(
            num_scalar_prefetch=0,
            grid=(B,),
            in_specs=[
                pl.BlockSpec((1, C, L), lambda b: (b, 0, 0)),
                pl.BlockSpec((Cr, C), lambda b: (0, 0)),
                pl.BlockSpec((C, Cr), lambda b: (0, 0)),
            ],
            out_specs=pl.BlockSpec((1, C, L), lambda b: (b, 0, 0)),
        ),
        compiler_params=pltpu.CompilerParams(
            dimension_semantics=("parallel",),
            vmem_limit_bytes=_vmem_limit(working),
        ),
    )(x, w1, w2)


# ----------------------------------------------------------------------------
# Two-pass tiled kernels (large per-batch slabs).
# ----------------------------------------------------------------------------
def _se_gate_kernel(x_ref, w1_ref, w2_ref, s_ref, acc_ref, *, inv_len):
    """Pass A: per-(b, c) mean over L tiles + excitation -> gate (1, C, 1)."""
    l = pl.program_id(1)

    @pl.when(l == 0)
    def _init():
        acc_ref[...] = jnp.zeros_like(acc_ref)

    # Partial channel sums for this L tile, accumulated in f32. keepdims keeps
    # channels on sublanes -> no relayout, and matches the scale pass layout.
    acc_ref[...] += jnp.sum(x_ref[0].astype(jnp.float32), axis=-1, keepdims=True)  # (C, 1)

    @pl.when(l == pl.num_programs(1) - 1)
    def _finalize():
        mean = acc_ref[...] * inv_len                                   # (C, 1)
        h = jnp.maximum(
            jnp.dot(w1_ref[...], mean, preferred_element_type=jnp.float32), 0.0)   # (Cr, 1)
        s = jax.nn.sigmoid(
            jnp.dot(w2_ref[...], h, preferred_element_type=jnp.float32))           # (C, 1)
        s_ref[0] = s.astype(s_ref.dtype)


def _se_scale_kernel(s_ref, x_ref, o_ref):
    """Pass B: lane-dense scale. s_ref: (1, C, 1) f32; x_ref/o_ref: (1, C, TL)."""
    o_ref[0] = (x_ref[0] * s_ref[0]).astype(o_ref.dtype)


def _se_two_pass(x, w1, w2, l_tile=None):
    B, C, L = x.shape
    Cr = w1.shape[0]
    isz = x.dtype.itemsize

    if l_tile is None:
        # Size the L tile against the double-buffered in+out tiles of pass B
        # (the larger of the two passes). Non-128-aligned L falls back to a
        # single full-L block (legal, just masked stores for small L).
        tl = _pick_l_tile(L, bytes_per_l=4 * C * isz)
    else:
        assert L % l_tile == 0 and (l_tile % 128 == 0 or l_tile == L)
        tl = l_tile
    n_l = L // tl
    inv_len = 1.0 / float(L)
    weight_bytes = 4 * (Cr * C) * 4  # both weights, double-buffered

    # ---- pass A: gates (B, C, 1) in f32 -------------------------------------
    gate_kernel = functools.partial(_se_gate_kernel, inv_len=inv_len)
    vmem_a = 2 * C * tl * isz + weight_bytes + 8 * C * 4
    gates = pl.pallas_call(
        gate_kernel,
        out_shape=jax.ShapeDtypeStruct((B, C, 1), jnp.float32),
        grid_spec=pltpu.PrefetchScalarGridSpec(
            num_scalar_prefetch=0,
            grid=(B, n_l),
            in_specs=[
                pl.BlockSpec((1, C, tl), lambda b, l: (b, 0, l)),
                pl.BlockSpec((Cr, C), lambda b, l: (0, 0)),
                pl.BlockSpec((C, Cr), lambda b, l: (0, 0)),
            ],
            out_specs=pl.BlockSpec((1, C, 1), lambda b, l: (b, 0, 0)),
            scratch_shapes=[pltpu.VMEM((C, 1), jnp.float32)],
        ),
        compiler_params=pltpu.CompilerParams(
            dimension_semantics=("parallel", "arbitrary"),
            vmem_limit_bytes=_vmem_limit(vmem_a),
        ),
    )(x, w1, w2)

    # ---- pass B: scale, fully parallel over (B, L tiles) --------------------
    vmem_b = 4 * C * tl * isz + 4 * C * 4
    out = pl.pallas_call(
        _se_scale_kernel,
        out_shape=jax.ShapeDtypeStruct((B, C, L), x.dtype),
        grid_spec=pltpu.PrefetchScalarGridSpec(
            num_scalar_prefetch=0,
            grid=(B, n_l),
            in_specs=[
                pl.BlockSpec((1, C, 1), lambda b, l: (b, 0, 0)),
                pl.BlockSpec((1, C, tl), lambda b, l: (b, 0, l)),
            ],
            out_specs=pl.BlockSpec((1, C, tl), lambda b, l: (b, 0, l)),
        ),
        compiler_params=pltpu.CompilerParams(
            dimension_semantics=("parallel", "parallel"),
            vmem_limit_bytes=_vmem_limit(vmem_b),
        ),
    )(gates, x)
    return out


# ----------------------------------------------------------------------------
# Public entry point.
# ----------------------------------------------------------------------------
def se_block_1d(x, w1, w2, *, max_fused_per_batch_bytes=_MAX_FUSED_PER_BATCH_BYTES,
                l_tile=None):
    """SEBlock1d forward.

    x:  (B, C, L)
    w1: (C//r, C)  first Linear, torch (out, in) layout, no bias
    w2: (C, C//r)  second Linear, torch (out, in) layout, no bias
    """
    B, C, L = x.shape
    per_batch_bytes = C * L * x.dtype.itemsize
    if l_tile is None and per_batch_bytes <= max_fused_per_batch_bytes:
        return _se_fused(x, w1, w2)
    return _se_two_pass(x, w1, w2, l_tile=l_tile)


def se_block_ref(x, w1, w2):
    """Pure-JAX reference mirroring the PyTorch forward."""
    y = jnp.mean(x, axis=-1)                     # (B, C)
    y = jnp.maximum(y @ w1.T, 0.0)               # (B, C//r)
    y = jax.nn.sigmoid(y @ w2.T)                 # (B, C)
    return x * y[..., None]


if __name__ == "__main__":
    key = jax.random.PRNGKey(0)
    k_small, k_large = jax.random.split(key)

    # --- test 1: tiny shape, exercises the per-batch fused path -------------
    B, C, L, r = 2, 16, 32, 4
    Cr = C // r
    kx, k1, k2 = jax.random.split(k_small, 3)
    x = jax.random.normal(kx, (B, C, L), dtype=jnp.float32)
    w1 = jax.random.normal(k1, (Cr, C), dtype=jnp.float32) * 0.1   # torch (out, in)
    w2 = jax.random.normal(k2, (C, Cr), dtype=jnp.float32) * 0.1

    out = jax.block_until_ready(se_block_1d(x, w1, w2))
    ref = se_block_ref(x, w1, w2)
    assert out.shape == (B, C, L)
    assert jnp.allclose(out, ref, atol=1e-5, rtol=1e-4), "fused path mismatch"

    # --- test 2: lane-dense L, forced through the tiled two-pass path -------
    B2, C2, L2, r2 = 2, 32, 512, 4
    Cr2 = C2 // r2
    kx2, k12, k22 = jax.random.split(k_large, 3)
    x2 = jax.random.normal(kx2, (B2, C2, L2), dtype=jnp.float32)
    w12 = jax.random.normal(k12, (Cr2, C2), dtype=jnp.float32) * 0.1
    w22 = jax.random.normal(k22, (C2, Cr2), dtype=jnp.float32) * 0.1

    out2 = jax.block_until_ready(se_block_1d(x2, w12, w22, l_tile=128))
    ref2 = se_block_ref(x2, w12, w22)
    assert out2.shape == (B2, C2, L2)
    assert jnp.allclose(out2, ref2, atol=1e-5, rtol=1e-4), "two-pass path mismatch"

    print("KERNEL_OK")
</pallas_src>

<mosaic_0001>
module attributes {stable_mosaic.version = 11 : i64} {
  func.func @_se_fused_kernel(%arg0: i32, %arg1: memref<1x16x32xf32, #tpu.memory_space<vmem>>, %arg2: memref<4x16xf32, #tpu.memory_space<vmem>>, %arg3: memref<16x4xf32, #tpu.memory_space<vmem>>, %arg4: memref<1x16x32xf32, #tpu.memory_space<vmem>>) attributes {dimension_semantics = [#tpu.dimension_semantics<parallel>], iteration_bounds = array<i64: 2>, scalar_prefetch = 0 : i64, scratch_operands = 0 : i64, tpu.core_type = #tpu.core_type<tc>, window_params = [{transform_indices = @transform_0, window_bounds = array<i64: 1, 16, 32>}, {pipeline_mode = #tpu.pipeline_mode<synchronous>, transform_indices = @transform_1, window_bounds = array<i64: 4, 16>}, {pipeline_mode = #tpu.pipeline_mode<synchronous>, transform_indices = @transform_2, window_bounds = array<i64: 16, 4>}, {transform_indices = @transform_3, window_bounds = array<i64: 1, 16, 32>}]} {
    %c0 = arith.constant 0 : index
    %c0_0 = arith.constant 0 : index
    %c0_1 = arith.constant 0 : index
    %0 = vector.load %arg1[%c0, %c0_0, %c0_1] : memref<1x16x32xf32, #tpu.memory_space<vmem>>, vector<1x16x32xf32>
    %1 = vector.shape_cast %0 : vector<1x16x32xf32> to vector<16x32xf32>
    %cst = arith.constant dense<0.000000e+00> : vector<16xf32>
    %2 = vector.multi_reduction <add>, %1, %cst [1] : vector<16x32xf32> to vector<16xf32>
    %3 = vector.shape_cast %2 : vector<16xf32> to vector<16x1xf32>
    %cst_2 = arith.constant 3.125000e-02 : f32
    %4 = vector.broadcast %cst_2 : f32 to vector<16x1xf32>
    %5 = arith.mulf %3, %4 : vector<16x1xf32>
    %c0_3 = arith.constant 0 : index
    %c0_4 = arith.constant 0 : index
    %6 = vector.load %arg2[%c0_3, %c0_4] : memref<4x16xf32, #tpu.memory_space<vmem>>, vector<4x16xf32>
    %cst_5 = arith.constant dense<0.000000e+00> : vector<4x1xf32>
    %7 = tpu.matmul %6, %5, %cst_5 {dimension_numbers = #tpu.dot_dimension_numbers<[1], [0], [0], [1], [0, 0, 1, 1], [], []>} : vector<4x16xf32>, vector<16x1xf32>, vector<4x1xf32> -> vector<4x1xf32>
    %cst_6 = arith.constant 0.000000e+00 : f32
    %8 = vector.broadcast %cst_6 : f32 to vector<4x1xf32>
    %9 = arith.maximumf %7, %8 : vector<4x1xf32>
    %c0_7 = arith.constant 0 : index
    %c0_8 = arith.constant 0 : index
    %10 = vector.load %arg3[%c0_7, %c0_8] : memref<16x4xf32, #tpu.memory_space<vmem>>, vector<16x4xf32>
    %cst_9 = arith.constant dense<0.000000e+00> : vector<16x1xf32>
    %11 = tpu.matmul %10, %9, %cst_9 {dimension_numbers = #tpu.dot_dimension_numbers<[1], [0], [0], [1], [0, 0, 1, 1], [], []>} : vector<16x4xf32>, vector<4x1xf32>, vector<16x1xf32> -> vector<16x1xf32>
    %12 = arith.negf %11 : vector<16x1xf32>
    %13 = math.exp %12 : vector<16x1xf32>
    %cst_10 = arith.constant 1.000000e+00 : f32
    %14 = vector.broadcast %cst_10 : f32 to vector<16x1xf32>
    %15 = arith.addf %14, %13 : vector<16x1xf32>
    %16 = arith.divf %14, %15 : vector<16x1xf32>
    %17 = vector.broadcast %16 : vector<16x1xf32> to vector<16x32xf32>
    %18 = arith.mulf %1, %17 : vector<16x32xf32>
    %c0_11 = arith.constant 0 : index
    %c0_12 = arith.constant 0 : index
    %c0_13 = arith.constant 0 : index
    %19 = vector.load %arg4[%c0_11, %c0_12, %c0_13] : memref<1x16x32xf32, #tpu.memory_space<vmem>>, vector<1x16x32xf32>
    %20 = vector.shape_cast %19 : vector<1x16x32xf32> to vector<16x32xf32>
    %21 = vector.shape_cast %18 : vector<16x32xf32> to vector<1x16x32xf32>
    tpu.vector_store %arg4[%c0_11, %c0_12, %c0_13], %21 {strides = array<i32>} : memref<1x16x32xf32, #tpu.memory_space<vmem>>, vector<1x16x32xf32>,
    return
  }
  func.func @transform_0(%arg0: i32) -> (i32, i32, i32) {
    %c0_i32 = arith.constant 0 : i32
    %c0_i32_0 = arith.constant 0 : i32
    %c0_i32_1 = arith.constant 0 : i32
    return %arg0, %c0_i32, %c0_i32_0 : i32, i32, i32
  }
  func.func @transform_1(%arg0: i32) -> (i32, i32) {
    %c0_i32 = arith.constant 0 : i32
    %c0_i32_0 = arith.constant 0 : i32
    %c0_i32_1 = arith.constant 0 : i32
    return %c0_i32, %c0_i32_0 : i32, i32
  }
  func.func @transform_2(%arg0: i32) -> (i32, i32) {
    %c0_i32 = arith.constant 0 : i32
    %c0_i32_0 = arith.constant 0 : i32
    %c0_i32_1 = arith.constant 0 : i32
    return %c0_i32, %c0_i32_0 : i32, i32
  }
  func.func @transform_3(%arg0: i32) -> (i32, i32, i32) {
    %c0_i32 = arith.constant 0 : i32
    %c0_i32_0 = arith.constant 0 : i32
    %c0_i32_1 = arith.constant 0 : i32
    return %arg0, %c0_i32, %c0_i32_0 : i32, i32, i32
  }
}

</mosaic_0001>

<llo_original>
// kernel: tpu_custom_call.1
$region0: #{tpu_custom_call.1}
  #allocation0 [shape = 'u32[]', space=smem, size = 0x4, offset = 0x4, fixed_abs, tag = 'smem constant byte address 0x4 - core index']
  #allocation1 [shape = 'u32[72,128]{1,0:T(1,128)}', space=vmem, size = 0x9000, scoped, tag = 'internal scratch']
  %s0 = inlined_call_operand.hbm [shape: f32[2,16,32], index: 0, kind: input, shape index: {}]
  %s1 = inlined_call_operand.vmem [shape: f32[4,16], index: 1, kind: input, shape index: {}]
  %s2 = inlined_call_operand.vmem [shape: f32[16,4], index: 2, kind: input, shape index: {}]
  %s3 = inlined_call_operand.hbm [shape: f32[2,16,32], index: 3, kind: output, shape index: {}]
  %s4 = sld [smem:[#allocation0]]
  $region49: #{tpu_custom_call.1} parent=0
    _
  %s6 = ssub.s32 1, %s4
  %s7 = scalar_select 0, %s6, %s4
  $region1: #{tpu_custom_call.1} parent=0
    #allocation2 [shape = 'u8[16384]{0}', space=vmem, size = 0x4000, scoped, tag = 'input window, operand 0']
    #allocation3 [shape = 's32[2]{0}', space=sflag, size = 0x8, scoped, tag = 'scoped memory for tpu_custom_call.1']
    #allocation4 [shape = 's32[2]{0}', space=sflag, size = 0x8, scoped, tag = 'scoped memory for tpu_custom_call.1']
    #allocation5 [shape = 'u8[16384]{0}', space=vmem, size = 0x4000, scoped, tag = 'output window, operand 0']
    %8 = vsyncpa [#allocation3], 0
    %s9 = scalar_lea.sflag [#allocation3], 1
    %10 = vsyncpa %s9, 0
    %11 = vsyncpa [#allocation4], 0
    %s12 = scalar_lea.sflag [#allocation4], 1
    %13 = vsyncpa %s12, 0
    loop: start=0, step=1, limit=4
    $region2: #{tpu_custom_call.1} parent=1 // loop_pre_header
      _
    $region3: #{tpu_custom_call.1} parent=1 // loop_header
      %s15 = sphi 0, %s19
      %p16 = scmp.ge.s32.totalorder %s15, 4
      %s25 = sphi 0, %s27
      %s28 = sphi 0, %s25
      %s29 = sphi 0, %s28
      %s45 = sphi 0, %s29
      %s49 = sphi 0, %s49
      %s51 = sphi 0, %s49
      %s52 = sphi 0, %s51
      %s66 = sphi 0, %s52
      %s70 = sphi 0, %s70
      %s72 = sphi 0, %s70
      %s73 = sphi 0, %s72
      %s87 = sphi 0, %s73
      %s93 = sphi 0, %s95
      %s96 = sphi 0, %s93
      %s97 = sphi 0, %s96
      %s113 = sphi 0, %s97
    $region4: #{tpu_custom_call.1} parent=1 // loop_header_branch
      %18 = sbr.rel (%p16) target = $region8
    $region5: #{tpu_custom_call.1} parent=1 // loop_body
      %s20 = ssub.s32 %s15, 1
      %s21 = ssub.s32 %s15, 2
      %s22 = sadd.s32 %s15, 1
      %s23 = ssub.s32 %s15, %s22
      %p24 = scmp.eq.s32.totalorder %s23, 0
      %s26 = sadd.s32 %s25, 1
      %s27 = scalar_select %p24, %s25, %s26
      %p30 = pneg %p24
      %p31 = scmp.eq.s32.totalorder %s15, 1
      %p32 = por %p30, %p31
      %p33 = scmp.ne.s32.totalorder %s25, %s28
      %p34 = scmp.eq.s32.totalorder %s15, 0
      %p35 = por %p33, %p34
      %p36 = scmp.ne.s32.totalorder %s25, %s28
      %p37 = scmp.eq.s32.totalorder %s20, 1
      %p38 = por %p36, %p37
      %p39 = scmp.ne.s32.totalorder %s28, %s29
      %p40 = scmp.eq.s32.totalorder %s20, 0
      %p41 = por %p39, %p40
      %p42 = scmp.ne.s32.totalorder %s28, %s29
      %p43 = scmp.eq.s32.totalorder %s21, 1
      %p44 = por %p42, %p43
      %p46 = scmp.ne.s32.totalorder %s29, %s45
      %p47 = scmp.eq.s32.totalorder %s21, 0
      %p48 = por %p46, %p47
      %s50 = sadd.s32 %s49, 1
      %p53 = scmp.eq.s32.totalorder %s15, 1
      %p54 = scmp.ne.s32.totalorder %s49, %s51
      %p55 = scmp.eq.s32.totalorder %s15, 0
      %p56 = por %p54, %p55
      %p57 = scmp.ne.s32.totalorder %s49, %s51
      %p58 = scmp.eq.s32.totalorder %s20, 1
      %p59 = por %p57, %p58
      %p60 = scmp.ne.s32.totalorder %s51, %s52
      %p61 = scmp.eq.s32.totalorder %s20, 0
      %p62 = por %p60, %p61
      %p63 = scmp.ne.s32.totalorder %s51, %s52
      %p64 = scmp.eq.s32.totalorder %s21, 1
      %p65 = por %p63, %p64
      %p67 = scmp.ne.s32.totalorder %s52, %s66
      %p68 = scmp.eq.s32.totalorder %s21, 0
      %p69 = por %p67, %p68
      %s71 = sadd.s32 %s70, 1
      %p74 = scmp.eq.s32.totalorder %s15, 1
      %p75 = scmp.ne.s32.totalorder %s70, %s72
      %p76 = scmp.eq.s32.totalorder %s15, 0
      %p77 = por %p75, %p76
      %p78 = scmp.ne.s32.totalorder %s70, %s72
      %p79 = scmp.eq.s32.totalorder %s20, 1
      %p80 = por %p78, %p79
      %p81 = scmp.ne.s32.totalorder %s72, %s73
      %p82 = scmp.eq.s32.totalorder %s20, 0
      %p83 = por %p81, %p82
      %p84 = scmp.ne.s32.totalorder %s72, %s73
      %p85 = scmp.eq.s32.totalorder %s21, 1
      %p86 = por %p84, %p85
      %p88 = scmp.ne.s32.totalorder %s73, %s87
      %p89 = scmp.eq.s32.totalorder %s21, 0
      %p90 = por %p88, %p89
      %s91 = ssub.s32 %s15, %s22
      %p92 = scmp.eq.s32.totalorder %s91, 0
      %s94 = sadd.s32 %s93, 1
      %s95 = scalar_select %p92, %s93, %s94
      %p98 = pneg %p92
      %p99 = scmp.eq.s32.totalorder %s15, 1
      %p100 = por %p98, %p99
      %p101 = scmp.ne.s32.totalorder %s93, %s96
      %p102 = scmp.eq.s32.totalorder %s15, 0
      %p103 = por %p101, %p102
      %p104 = scmp.ne.s32.totalorder %s93, %s96
      %p105 = scmp.eq.s32.totalorder %s20, 1
      %p106 = por %p104, %p105
      %p107 = scmp.ne.s32.totalorder %s96, %s97
      %p108 = scmp.eq.s32.totalorder %s20, 0
      %p109 = por %p107, %p108
      %p110 = scmp.ne.s32.totalorder %s96, %s97
      %p111 = scmp.eq.s32.totalorder %s21, 1
      %p112 = por %p110, %p111
      %p114 = scmp.ne.s32.totalorder %s97, %s113
      %p115 = scmp.eq.s32.totalorder %s21, 0
      %p116 = por %p114, %p115
      %p117 = scmp.le.s32.totalorder 1, %s15
      %p118 = scmp.lt.s32.totalorder %s15, 3
      %p119 = pnand %p117, %p118
      %p120 = pneg %p119
      // Predicated region
      $region9: #{tpu_custom_call.1} parent=5 // pred_check
        _
      $region10: #{tpu_custom_call.1} parent=5 // pred_check_branch
        %122 = sbr.rel (%p119) target = $region12
      $region11: #{tpu_custom_call.1} parent=5 // pred_region
        %s123 = ssub.s32 %s15, 1
        // Predicated region
        $region13: #{tpu_custom_call.1} parent=11 // pred_check
          %p124 = pneg %p62
        $region14: #{tpu_custom_call.1} parent=11 // pred_check_branch
          %126 = sbr.rel (%p124) target = $region16
        $region15: #{tpu_custom_call.1} parent=11 // pred_region
          _
        $region16: #{tpu_custom_call.1} parent=11 // pred_fallthru
          _
        // Predicated region
        $region17: #{tpu_custom_call.1} parent=11 // pred_check
          %p127 = pneg %p83
        $region18: #{tpu_custom_call.1} parent=11 // pred_check_branch
          %129 = sbr.rel (%p127) target = $region20
        $region19: #{tpu_custom_call.1} parent=11 // pred_region
          _
        $region20: #{tpu_custom_call.1} parent=11 // pred_fallthru
          _
      $region12: #{tpu_custom_call.1} parent=5 // pred_fallthru
        _
      %p130 = scmp.lt.s32.totalorder %s15, 2
      // Predicated region
      $region21: #{tpu_custom_call.1} parent=5 // pred_check
        %p131 = pneg %p130
      $region22: #{tpu_custom_call.1} parent=5 // pred_check_branch
        %133 = sbr.rel (%p131) target = $region24
      $region23: #{tpu_custom_call.1} parent=5 // pred_region
        // Predicated region
        $region25: #{tpu_custom_call.1} parent=23 // pred_check
          %p134 = pneg %p35
        $region26: #{tpu_custom_call.1} parent=23 // pred_check_branch
          %136 = sbr.rel (%p134) target = $region28
        $region27: #{tpu_custom_call.1} parent=23 // pred_region
          %s137 = sand.u32 %s25, 1
          %s138 = scalar_lea.sflag [#allocation3], %s137
          %s139 = sand.u32 %s25, 1
          %s140 = smul.addr %s139, 16
          %s141 = scalar_lea.vmem [#allocation2], %s140
          %143 = vsyncadd %s138, 0
          %s144 = smul.addr %s15, 2
          %s145 = smul.addr %s144, 8
          %s146 = scalar_lea.hbm %s0, %s145
          %s147 = sshll.u32 %s146, 4
          %s148 = int_to_ptr.hbm [resolvable:$true] %s147
          %s149 = sshll.u32 %s141, 4
          %s150 = int_to_ptr.vmem [resolvable:$true] %s149
          %155 = dma.hbm_to_vmem [thread:$0]  %s148, 256, %s150, %s138, 128, 128, 8
        $region28: #{tpu_custom_call.1} parent=23 // pred_fallthru
          _
      $region24: #{tpu_custom_call.1} parent=5 // pred_fallthru
        _
      %p156 = scmp.le.s32.totalorder 1, %s15
      %p157 = scmp.lt.s32.totalorder %s15, 3
      %p158 = pnand %p156, %p157
      %p159 = pneg %p158
      // Predicated region
      $region29: #{tpu_custom_call.1} parent=5 // pred_check
        _
      $region30: #{tpu_custom_call.1} parent=5 // pred_check_branch
        %161 = sbr.rel (%p158) target = $region32
      $region31: #{tpu_custom_call.1} parent=5 // pred_region
        %s162 = ssub.s32 %s15, 1
        %s163 = sand.u32 %s28, 1
        %s164 = scalar_lea.sflag [#allocation3], %s163
        %s165 = sand.u32 %s28, 1
        %s166 = smul.addr %s165, 16
        %s167 = scalar_lea.vmem [#allocation2], %s166
        // Predicated region
        $region33: #{tpu_custom_call.1} parent=31 // pred_check
          %p168 = pneg %p41
        $region34: #{tpu_custom_call.1} parent=31 // pred_check_branch
          %170 = sbr.rel (%p168) target = $region36
        $region35: #{tpu_custom_call.1} parent=31 // pred_region
          %172 = dma.done %s164, 256
        $region36: #{tpu_custom_call.1} parent=31 // pred_fallthru
          _
        %s173 = sand.u32 %s28, 1
        %s174 = scalar_lea.sflag [#allocation3], %s173
        %s175 = sand.u32 %s28, 1
        %s176 = smul.addr %s175, 16
        %s177 = scalar_lea.vmem [#allocation2], %s176
        %p178 = pneg %p41
        %p179 = pneg %p38
        %p180 = pneg %p62
        %p181 = pneg %p59
        %p182 = pneg %p83
        %p183 = pneg %p80
        %p184 = pneg %p109
        %p185 = pneg %p106
        %s186 = sand.u32 %s96, 1
        %s187 = scalar_lea.sflag [#allocation4], %s186
        %s188 = sand.u32 %s96, 1
        %s189 = smul.addr %s188, 16
        %s190 = scalar_lea.vmem [#allocation5], %s189
        %v191 = vld [vmem:[%s167] sm:$0xff]
        %v192 = vld [vmem:[%s167 + $0x8] sm:$0xff]
        %vm193 = vcmask 261120
        %v194 = vsel %vm193, %v191, 0.0
        %195 = vadd.xlane.f32.xlu0 %v194
        %v196 = vpop.xlane.xlu0 %195
        %v197 = vsel %vm193, %v192, 0.0
        %198 = vadd.xlane.f32.xlu0 %v197
        %v199 = vpop.xlane.xlu0 %198
        %v200 = vmul.f32 %v196, 0.03125
        %v201 = vmul.f32 %v199, 0.03125
        %v202 = vld [vmem:[%s1] sm:$0xf]
        %vm203 = vcmask 130048
        %v205 = vsel %vm203, %v202, 0
        %207 = vmatpush.msra.mxu0 0.0
        %208 = vmatpush.msra.mxu0 0.0
        %209 = vmatpush.msra.mxu0 0.0
        %210 = vmatpush.msra.mxu0 0.0
        %211 = vmatpush.msra.mxu0 0.0
        %212 = vmatpush.msra.mxu0 0.0
        %213 = vmatpush.msra.mxu0 0.0
        %214 = vmatpush.msra.mxu0 0.0
        %215 = vmatpush.msra.mxu0 0.0
        %216 = vmatpush.msra.mxu0 0.0
        %217 = vmatpush.msra.mxu0 0.0
        %218 = vmatpush.msra.mxu0 0.0
        %219 = vmatpush.msra.mxu0 0.0
        %220 = vmatpush.msra.mxu0 0.0
        %221 = vmatpush.msra.mxu0 %v201
        %222 = vmatpush.msra.mxu0 %v200
        %223 = vmatmul.f32.gmra.mxu0 %v205
        %v224 = vpop.f32.mrf.mxu0
        %v225 = vadd.f32 0.0, %v224
        %226 = vdwg.mxu0
        %v227 = vmax.f32 %v225, 0.0
        %v228 = vld [vmem:[%s2] sm:$0xff]
        %v229 = vld [vmem:[%s2 + $0x8] sm:$0xff]
        %vm230 = vcmask 31744
        %v232 = vsel %vm230, %v228, 0
        %v235 = vsel %vm230, %v229, 0
        %vm237 = vcmask 1043456
        %v239 = vsel %vm237, %v227, 0
        %241 = vmatpush.msra.mxu0 0.0
        %242 = vmatpush.msra.mxu0 0.0
        %243 = vmatpush.msra.mxu0 0.0
        %244 = vmatpush.msra.mxu0 0.0
        %245 = vmatpush.msra.mxu0 0.0
        %246 = vmatpush.msra.mxu0 0.0
        %247 = vmatpush.msra.mxu0 0.0
        %248 = vmatpush.msra.mxu0 0.0
        %249 = vmatpush.msra.mxu0 0.0
        %250 = vmatpush.msra.mxu0 0.0
        %251 = vmatpush.msra.mxu0 0.0
        %252 = vmatpush.msra.mxu0 0.0
        %253 = vmatpush.msra.mxu0 0.0
        %254 = vmatpush.msra.mxu0 0.0
        %255 = vmatpush.msra.mxu0 0.0
        %256 = vmatpush.msra.mxu0 %v239
        %257 = vmatmul.f32.gmra.mxu0 %v232
        %v258 = vpop.f32.mrf.mxu0
        %v259 = vadd.f32 0.0, %v258
        %260 = vmatmul.f32.gmra.mxu0 %v235
        %v261 = vpop.f32.mrf.mxu0
        %v262 = vadd.f32 0.0, %v261
        %263 = vdwg.mxu0
        %v264 = vxor.u32 %v259, 2147483648
        %v265 = vxor.u32 %v262, 2147483648
        %v266 = vmul.f32 %v264, 1.442695
        %v267 = vpow.pop %v266
        %v268 = vmul.f32 %v265, 1.442695
        %v269 = vpow.pop %v268
        %v270 = vadd.f32 %v267, 1.0
        %v271 = vadd.f32 %v269, 1.0
        %v272 = vrcp.pop %v270
        %v273 = vmul.f32 %v270, %v272
        %v274 = vsub.f32 1.0, %v273
        %v275 = vmul.f32 %v272, %v274
        %v276 = vadd.f32 %v272, %v275
        %vm277 = vweird.f32 %v270
        %vm278 = vweird.f32 %v272
        %vm279 = vmor %vm277, %vm278
        %v280 = vsel %vm279, %v272, %v276
        %v281 = vand.u32 2147483647, %v270
        %vm282 = vcmp.eq.f32.partialorder %v281, 8.507059e+37
        %v283 = vand.u32 %v270, 2147483648
        %v284 = vor.u32 1.1754944e-38, %v283
        %v285 = vsel %vm282, %v284, %v280
        %v286 = vmul.f32 1.0, %v285
        %v287 = vrcp.pop %v271
        %v288 = vmul.f32 %v271, %v287
        %v289 = vsub.f32 1.0, %v288
        %v290 = vmul.f32 %v287, %v289
        %v291 = vadd.f32 %v287, %v290
        %vm292 = vweird.f32 %v271
        %vm293 = vweird.f32 %v287
        %vm294 = vmor %vm292, %vm293
        %v295 = vsel %vm294, %v287, %v291
        %v296 = vand.u32 2147483647, %v271
        %vm297 = vcmp.eq.f32.partialorder %v296, 8.507059e+37
        %v298 = vand.u32 %v271, 2147483648
        %v299 = vor.u32 1.1754944e-38, %v298
        %v300 = vsel %vm297, %v299, %v295
        %v301 = vmul.f32 1.0, %v300
        %303 = vset.pattern.permute.xlu0 0
        %304 = vperm.xlu0 %303, %v286
        %v305 = vpop.permute.xlu0 %304
        %308 = vset.pattern.permute.xlu0 0
        %309 = vperm.xlu0 %308, %v301
        %v310 = vpop.permute.xlu0 %309
        %v312 = vmul.f32 %v191, %v305
        %v313 = vmul.f32 %v192, %v310
        %314 = vst.msk [vmem:[%s190] sm:$0xff] %vm193, %v312
        %315 = vst.msk [vmem:[%s190 + $0x8] sm:$0xff] %vm193, %v313
        %s316 = sand.u32 %s96, 1
        %s317 = scalar_lea.sflag [#allocation4], %s316
        %s318 = sand.u32 %s96, 1
        %s319 = smul.addr %s318, 16
        %s320 = scalar_lea.vmem [#allocation5], %s319
        // Predicated region
        $region37: #{tpu_custom_call.1} parent=31 // pred_check
          %p321 = pneg %p106
        $region38: #{tpu_custom_call.1} parent=31 // pred_check_branch
          %323 = sbr.rel (%p321) target = $region40
        $region39: #{tpu_custom_call.1} parent=31 // pred_region
          %325 = vsyncadd %s317, 0
          %s326 = smul.addr %s20, 2
          %s327 = smul.addr %s326, 8
          %s328 = scalar_lea.hbm %s3, %s327
          %s329 = sshll.u32 %s320, 4
          %s330 = int_to_ptr.vmem [resolvable:$true] %s329
          %s331 = sshll.u32 %s328, 4
          %s332 = int_to_ptr.hbm [resolvable:$true] %s331
          %337 = dma.vmem_to_hbm [thread:$0]  %s330, 256, %s332, %s317, 128, 128, 8
        $region40: #{tpu_custom_call.1} parent=31 // pred_fallthru
          _
      $region32: #{tpu_custom_call.1} parent=5 // pred_fallthru
        _
      %p338 = scmp.le.s32.totalorder 2, %s15
      // Predicated region
      $region41: #{tpu_custom_call.1} parent=5 // pred_check
        %p339 = pneg %p338
      $region42: #{tpu_custom_call.1} parent=5 // pred_check_branch
        %341 = sbr.rel (%p339) target = $region44
      $region43: #{tpu_custom_call.1} parent=5 // pred_region
        %s342 = ssub.s32 %s15, 2
        // Predicated region
        $region45: #{tpu_custom_call.1} parent=43 // pred_check
          %p343 = pneg %p112
        $region46: #{tpu_custom_call.1} parent=43 // pred_check_branch
          %345 = sbr.rel (%p343) target = $region48
        $region47: #{tpu_custom_call.1} parent=43 // pred_region
          %s346 = sand.u32 %s97, 1
          %s347 = scalar_lea.sflag [#allocation4], %s346
          %s348 = sand.u32 %s97, 1
          %s349 = smul.addr %s348, 16
          %s350 = scalar_lea.vmem [#allocation5], %s349
          %352 = dma.done %s347, 256
        $region48: #{tpu_custom_call.1} parent=43 // pred_fallthru
          _
      $region44: #{tpu_custom_call.1} parent=5 // pred_fallthru
        _
    $region6: #{tpu_custom_call.1} parent=1 // loop_footer
      %s19 = sadd.s32 1, %s15
    $region7: #{tpu_custom_call.1} parent=1 // loop_footer_branch
      %14 = sbr.rel target = $region3
    $region8: #{tpu_custom_call.1} parent=1 // loop_exit
      _
    %353 = vsyncpa [#allocation3], 1
    %s354 = scalar_lea.sflag [#allocation3], 1
    %355 = vsyncpa %s354, 1
    %356 = vsyncpa [#allocation4], 1
    %s357 = scalar_lea.sflag [#allocation4], 1
    %358 = vsyncpa %s357, 1

</llo_original>
